<compile_context>
chip_gen: v6e
topology: v6e:2x2x1
jax: 0.10.0
libtpu: 0.0.40
codegen_flags: <defaults>
</compile_context>

<pallas_src>
import functools

import jax
import jax.numpy as jnp
from jax import lax
from jax.experimental import pallas as pl
from jax.experimental.pallas import tpu as pltpu


def _round_up(n, m):
    return ((n + m - 1) // m) * m


def _sigmoid(x):
    # sigmoid(x) == 0.5 * tanh(x / 2) + 0.5 ; tanh runs in the (otherwise idle)
    # EUP slot instead of a VPU divide. Mathematically identical to 1/(1+e^-x).
    return 0.5 * jnp.tanh(0.5 * x) + 0.5


def _mlp_kernel(x_ref, w1_ref, w2_ref, o_ref):
    x = x_ref[...]          # (TILE_B, 40)  f32, streamed per grid step
    w1 = w1_ref[...]        # (40, 128)     f32, VMEM-resident (H zero-padded)
    w2_row = w2_ref[...]    # (1, 128)      f32, VMEM-resident (W2^T, zero-padded)

    # Layer 1 on the MXU with f32 accumulate.
    z = jnp.dot(x, w1, preferred_element_type=jnp.float32)       # (TILE_B, 128)
    z2 = _sigmoid(z)                                              # EUP

    # Layer 2 as A @ B^T on the MXU: contract the last dims of (1,128) and
    # (TILE_B,128) -> lane-dense (1, TILE_B) slab, no transpose of z2 ever
    # materialized.  The 28 padded hidden lanes contribute exactly 0 because
    # w2_row is zero there (do NOT replace this with a sum over z2 directly).
    z3 = lax.dot_general(
        w2_row, z2,
        dimension_numbers=(((1,), (1,)), ((), ())),
        preferred_element_type=jnp.float32,
    )                                                             # (1, TILE_B)
    o_ref[...] = _sigmoid(z3).astype(o_ref.dtype)


@functools.partial(jax.jit, static_argnames=("max_tile_b",))
def _forward_padded(x, w1p, w2_row, *, max_tile_b=1024):
    """x: [B, 40] f32, w1p: [40, 128] f32, w2_row: [1, 128] f32 -> [B, 1] f32."""
    B, in_dim = x.shape
    hp = w1p.shape[1]

    # ---- tile selection ---------------------------------------------------
    b_al = _round_up(B, 128)                 # lane-aligned logical extent
    tile_b = min(max_tile_b, b_al)
    # v7x has 2 TensorCores/chip: give the "parallel" grid axis >= 2 steps when
    # the batch is large enough so both cores get work (no-op perf-wise on the
    # single-TC v5e/v6e beyond one extra tiny grid step).
    if b_al >= 256 and pl.cdiv(B, tile_b) < 2:
        tile_b = _round_up(pl.cdiv(b_al, 2), 128)
    grid = pl.cdiv(B, tile_b)                # ragged last X block if B % tile_b
    out_cols = grid * tile_b                 # pad only the tiny output slab

    # X is NOT padded or copied: the final grid step may read past row B; those
    # undefined rows stay in their own output lanes (>= B) and are sliced off.
    out_row = pl.pallas_call(
        _mlp_kernel,
        out_shape=jax.ShapeDtypeStruct((1, out_cols), jnp.float32),
        grid=(grid,),
        in_specs=[
            pl.BlockSpec((tile_b, in_dim), lambda i: (i, 0)),   # X: streamed
            pl.BlockSpec((in_dim, hp), lambda i: (0, 0)),       # W1: resident
            pl.BlockSpec((1, hp), lambda i: (0, 0)),            # W2^T: resident
        ],
        out_specs=pl.BlockSpec((1, tile_b), lambda i: (0, i)),  # lane-dense slab
        compiler_params=pltpu.CompilerParams(
            dimension_semantics=("parallel",),
        ),
    )(x, w1p, w2_row)

    # (1, out_cols) lane-dense slab -> (B, 1) column, dropping the padded lanes.
    return out_row[0, :B].reshape(B, 1)


class NeuralNetworkPallas:
    """Mirror of the torch module's forward; weight padding is done ONCE here."""

    def __init__(self, w1, w2):
        in_dim, hidden = w1.shape
        hidden2, out_dim = w2.shape
        assert hidden2 == hidden and out_dim == 1
        w1 = w1.astype(jnp.float32)
        w2 = w2.astype(jnp.float32)
        hp = _round_up(hidden, 128)
        # Zero-pad hidden dim to a full 128-lane group.  The padded W2 entries
        # MUST remain exactly zero (see note in _mlp_kernel).
        self.w1p = jnp.pad(w1, ((0, 0), (0, hp - hidden)))        # (40, 128)
        self.w2_row = jnp.pad(w2.T, ((0, 0), (0, hp - hidden)))   # (1, 128)

    def forward(self, x):
        return _forward_padded(x.astype(jnp.float32), self.w1p, self.w2_row)

    __call__ = forward


def reference_forward(x, w1, w2):
    # Full-precision reference so the comparison is well defined.
    with jax.default_matmul_precision("highest"):
        z2 = jax.nn.sigmoid(x @ w1)
        return jax.nn.sigmoid(z2 @ w2)


if __name__ == "__main__":
    key = jax.random.PRNGKey(0)
    k_x, k_w1, k_w2, k_x2 = jax.random.split(key, 4)

    input_size, hidden_size, output_size = 40, 100, 1

    # Deterministic "torch.randn"-style initialization (standard normal).
    w1 = jax.random.normal(k_w1, (input_size, hidden_size), dtype=jnp.float32)
    w2 = jax.random.normal(k_w2, (hidden_size, output_size), dtype=jnp.float32)
    net = NeuralNetworkPallas(w1, w2)

    batch = 8
    x = jax.random.normal(k_x, (batch, input_size), dtype=jnp.float32)
    out = net(x)
    jax.block_until_ready(out)
    ref = reference_forward(x, w1, w2)
    assert out.shape == (batch, output_size)
    assert jnp.allclose(out, ref, atol=2e-5, rtol=2e-5)

    # Multi-step tiled path: B=600 -> tile_b=384, grid=2 (both v7x cores busy),
    # ragged last X block, and NO padded HBM copy of X.
    batch2 = 600
    x2 = jax.random.normal(k_x2, (batch2, input_size), dtype=jnp.float32)
    out2 = net(x2)
    jax.block_until_ready(out2)
    ref2 = reference_forward(x2, w1, w2)
    assert out2.shape == (batch2, output_size)
    assert jnp.allclose(out2, ref2, atol=2e-5, rtol=2e-5)

    print("KERNEL_OK")
</pallas_src>

<mosaic_0001>
module attributes {stable_mosaic.version = 11 : i64} {
  func.func @_mlp_kernel(%arg0: i32, %arg1: memref<128x40xf32, #tpu.memory_space<vmem>>, %arg2: memref<40x128xf32, #tpu.memory_space<vmem>>, %arg3: memref<1x128xf32, #tpu.memory_space<vmem>>, %arg4: memref<1x128xf32, #tpu.memory_space<vmem>>) attributes {dimension_semantics = [#tpu.dimension_semantics<parallel>], iteration_bounds = array<i64: 1>, scalar_prefetch = 0 : i64, scratch_operands = 0 : i64, tpu.core_type = #tpu.core_type<tc>, window_params = [{transform_indices = @transform_0, window_bounds = array<i64: 128, 40>}, {pipeline_mode = #tpu.pipeline_mode<synchronous>, transform_indices = @transform_1, window_bounds = array<i64: 40, 128>}, {pipeline_mode = #tpu.pipeline_mode<synchronous>, transform_indices = @transform_2, window_bounds = array<i64: 1, 128>}, {transform_indices = @transform_3, window_bounds = array<i64: 1, 128>}]} {
    %c0 = arith.constant 0 : index
    %c0_0 = arith.constant 0 : index
    %0 = vector.load %arg1[%c0, %c0_0] : memref<128x40xf32, #tpu.memory_space<vmem>>, vector<128x40xf32>
    %c0_1 = arith.constant 0 : index
    %c0_2 = arith.constant 0 : index
    %1 = vector.load %arg2[%c0_1, %c0_2] : memref<40x128xf32, #tpu.memory_space<vmem>>, vector<40x128xf32>
    %c0_3 = arith.constant 0 : index
    %c0_4 = arith.constant 0 : index
    %2 = vector.load %arg3[%c0_3, %c0_4] : memref<1x128xf32, #tpu.memory_space<vmem>>, vector<1x128xf32>
    %cst = arith.constant dense<0.000000e+00> : vector<128x128xf32>
    %3 = tpu.matmul %0, %1, %cst {dimension_numbers = #tpu.dot_dimension_numbers<[1], [0], [0], [1], [0, 0, 1, 1], [], []>} : vector<128x40xf32>, vector<40x128xf32>, vector<128x128xf32> -> vector<128x128xf32>
    %cst_5 = arith.constant 5.000000e-01 : f32
    %4 = vector.broadcast %cst_5 : f32 to vector<128x128xf32>
    %5 = arith.mulf %4, %3 : vector<128x128xf32>
    %6 = math.tanh %5 : vector<128x128xf32>
    %cst_6 = arith.constant 5.000000e-01 : f32
    %7 = vector.broadcast %cst_6 : f32 to vector<128x128xf32>
    %8 = arith.mulf %7, %6 : vector<128x128xf32>
    %cst_7 = arith.constant 5.000000e-01 : f32
    %9 = vector.broadcast %cst_7 : f32 to vector<128x128xf32>
    %10 = arith.addf %8, %9 : vector<128x128xf32>
    %cst_8 = arith.constant dense<0.000000e+00> : vector<1x128xf32>
    %11 = tpu.matmul %2, %10, %cst_8 {dimension_numbers = #tpu.dot_dimension_numbers<[1], [1], [0], [0], [0, 0, 1, 0], [], []>} : vector<1x128xf32>, vector<128x128xf32>, vector<1x128xf32> -> vector<1x128xf32>
    %cst_9 = arith.constant 5.000000e-01 : f32
    %12 = vector.broadcast %cst_9 : f32 to vector<1x128xf32>
    %13 = arith.mulf %12, %11 : vector<1x128xf32>
    %14 = math.tanh %13 : vector<1x128xf32>
    %cst_10 = arith.constant 5.000000e-01 : f32
    %15 = vector.broadcast %cst_10 : f32 to vector<1x128xf32>
    %16 = arith.mulf %15, %14 : vector<1x128xf32>
    %cst_11 = arith.constant 5.000000e-01 : f32
    %17 = vector.broadcast %cst_11 : f32 to vector<1x128xf32>
    %18 = arith.addf %16, %17 : vector<1x128xf32>
    %c0_12 = arith.constant 0 : index
    %c0_13 = arith.constant 0 : index
    %19 = vector.load %arg4[%c0_12, %c0_13] : memref<1x128xf32, #tpu.memory_space<vmem>>, vector<1x128xf32>
    tpu.vector_store %arg4[%c0_12, %c0_13], %18 {strides = array<i32>} : memref<1x128xf32, #tpu.memory_space<vmem>>, vector<1x128xf32>,
    return
  }
  func.func @transform_0(%arg0: i32) -> (i32, i32) {
    %c0_i32 = arith.constant 0 : i32
    %c0_i32_0 = arith.constant 0 : i32
    return %arg0, %c0_i32 : i32, i32
  }
  func.func @transform_1(%arg0: i32) -> (i32, i32) {
    %c0_i32 = arith.constant 0 : i32
    %c0_i32_0 = arith.constant 0 : i32
    %c0_i32_1 = arith.constant 0 : i32
    return %c0_i32, %c0_i32_0 : i32, i32
  }
  func.func @transform_2(%arg0: i32) -> (i32, i32) {
    %c0_i32 = arith.constant 0 : i32
    %c0_i32_0 = arith.constant 0 : i32
    %c0_i32_1 = arith.constant 0 : i32
    return %c0_i32, %c0_i32_0 : i32, i32
  }
  func.func @transform_3(%arg0: i32) -> (i32, i32) {
    %c0_i32 = arith.constant 0 : i32
    %c0_i32_0 = arith.constant 0 : i32
    return %c0_i32, %arg0 : i32, i32
  }
}

</mosaic_0001>

<llo_original>
// kernel: _forward_padded.1
$region0: #{_forward_padded.1}
  #allocation0 [shape = 'u32[]', space=smem, size = 0x4, offset = 0x4, fixed_abs, tag = 'smem constant byte address 0x4 - core index']
  #allocation1 [shape = 'u32[144,128]{1,0:T(1,128)}', space=vmem, size = 0x12000, scoped, tag = 'internal scratch']
  %s0 = inlined_call_operand.hbm [shape: f32[8,40], index: 0, kind: input, shape index: {}]
  %s1 = inlined_call_operand.hbm [shape: f32[40,128], index: 1, kind: input, shape index: {}]
  %s2 = inlined_call_operand.vmem [shape: f32[1,128], index: 2, kind: input, shape index: {}]
  %s3 = inlined_call_operand.vmem [shape: f32[1,128], index: 3, kind: output, shape index: {}]
  %s4 = sld [smem:[#allocation0]]
  $region30: #{_forward_padded.1} parent=0
    _
  %s6 = ssub.s32 1, %s4
  %s7 = scalar_select 0, %s6, %s4
  $region1: #{_forward_padded.1} parent=0
    #allocation2 [shape = 'u8[65536]{0}', space=vmem, size = 0x10000, scoped, tag = 'input window, operand 0, single buffered']
    #allocation3 [shape = 's32[1]{0}', space=sflag, size = 0x4, scoped, tag = 'scoped memory for _forward_padded.1']
    #allocation4 [shape = 'u8[20480]{0}', space=vmem, size = 0x5000, scoped, tag = 'input window, operand 1, single buffered']
    #allocation5 [shape = 's32[1]{0}', space=sflag, size = 0x4, scoped, tag = 'scoped memory for _forward_padded.1']
    %8 = vsyncpa [#allocation3], 0
    %9 = vsyncpa [#allocation5], 0
    // Predicated region
    $region2: #{_forward_padded.1} parent=1 // pred_check
      _
    $region3: #{_forward_padded.1} parent=1 // pred_check_branch
      %11 = sbr.rel (0) target = $region5
    $region4: #{_forward_padded.1} parent=1 // pred_region
      %s13 = ssub.s32 2048, 128
      %14 = vsyncadd [#allocation3], %s13
      %s15 = sshll.u32 [#allocation2], 4
      %s16 = int_to_ptr.vmem [resolvable:$true] %s15
      %21 = dma.hbm_to_vmem [thread:$0]  %s0, 128, %s16, [#allocation3], 128, 128, 8
    $region5: #{_forward_padded.1} parent=1 // pred_fallthru
      _
    // Predicated region
    $region6: #{_forward_padded.1} parent=1 // pred_check
      _
    $region7: #{_forward_padded.1} parent=1 // pred_check_branch
      %23 = sbr.rel (0) target = $region9
    $region8: #{_forward_padded.1} parent=1 // pred_region
      %s25 = ssub.s32 640, 640
      %26 = vsyncadd [#allocation5], %s25
      %s27 = sshll.u32 [#allocation4], 4
      %s28 = int_to_ptr.vmem [resolvable:$true] %s27
      %33 = dma.hbm_to_vmem [thread:$0]  %s1, 640, %s28, [#allocation5], 128, 128, 8
    $region9: #{_forward_padded.1} parent=1 // pred_fallthru
      _
    // Predicated region
    $region10: #{_forward_padded.1} parent=1 // pred_check
      _
    $region11: #{_forward_padded.1} parent=1 // pred_check_branch
      %35 = sbr.rel (0) target = $region13
    $region12: #{_forward_padded.1} parent=1 // pred_region
      _
    $region13: #{_forward_padded.1} parent=1 // pred_fallthru
      _
    // Predicated region
    $region14: #{_forward_padded.1} parent=1 // pred_check
      _
    $region15: #{_forward_padded.1} parent=1 // pred_check_branch
      %37 = sbr.rel (0) target = $region17
    $region16: #{_forward_padded.1} parent=1 // pred_region
      %38 = dma.done [#allocation3], 2048
    $region17: #{_forward_padded.1} parent=1 // pred_fallthru
      _
    // Predicated region
    $region18: #{_forward_padded.1} parent=1 // pred_check
      _
    $region19: #{_forward_padded.1} parent=1 // pred_check_branch
      %40 = sbr.rel (0) target = $region21
    $region20: #{_forward_padded.1} parent=1 // pred_region
      %41 = dma.done [#allocation5], 640
    $region21: #{_forward_padded.1} parent=1 // pred_fallthru
      _
    %v42 = vld [vmem:[#allocation2] sm:$0xff]
    %v43 = vld [vmem:[#allocation2 + $0x8] sm:$0xff]
    %v44 = vld [vmem:[#allocation2 + $0x10] sm:$0xff]
    %v45 = vld [vmem:[#allocation2 + $0x18] sm:$0xff]
    %v46 = vld [vmem:[#allocation2 + $0x20] sm:$0xff]
    %v47 = vld [vmem:[#allocation2 + $0x28] sm:$0xff]
    %v48 = vld [vmem:[#allocation2 + $0x30] sm:$0xff]
    %v49 = vld [vmem:[#allocation2 + $0x38] sm:$0xff]
    %v50 = vld [vmem:[#allocation2 + $0x40] sm:$0xff]
    %v51 = vld [vmem:[#allocation2 + $0x48] sm:$0xff]
    %v52 = vld [vmem:[#allocation2 + $0x50] sm:$0xff]
    %v53 = vld [vmem:[#allocation2 + $0x58] sm:$0xff]
    %v54 = vld [vmem:[#allocation2 + $0x60] sm:$0xff]
    %v55 = vld [vmem:[#allocation2 + $0x68] sm:$0xff]
    %v56 = vld [vmem:[#allocation2 + $0x70] sm:$0xff]
    %v57 = vld [vmem:[#allocation2 + $0x78] sm:$0xff]
    %v58 = vld [vmem:[#allocation4] sm:$0xff]
    %v59 = vld [vmem:[#allocation4 + $0x8] sm:$0xff]
    %v60 = vld [vmem:[#allocation4 + $0x10] sm:$0xff]
    %v61 = vld [vmem:[#allocation4 + $0x18] sm:$0xff]
    %v62 = vld [vmem:[#allocation4 + $0x20] sm:$0xff]
    %v63 = vld [vmem:[%s2] sm:$0x1]
    %vm64 = vcmask 326656
    %v66 = vsel %vm64, %v42, 0
    %v69 = vsel %vm64, %v43, 0
    %v72 = vsel %vm64, %v44, 0
    %v75 = vsel %vm64, %v45, 0
    %v78 = vsel %vm64, %v46, 0
    %v81 = vsel %vm64, %v47, 0
    %v84 = vsel %vm64, %v48, 0
    %v87 = vsel %vm64, %v49, 0
    %v90 = vsel %vm64, %v50, 0
    %v93 = vsel %vm64, %v51, 0
    %v96 = vsel %vm64, %v52, 0
    %v99 = vsel %vm64, %v53, 0
    %v102 = vsel %vm64, %v54, 0
    %v105 = vsel %vm64, %v55, 0
    %v108 = vsel %vm64, %v56, 0
    %v111 = vsel %vm64, %v57, 0
    %113 = vmatprep.subr.mxu0 0.0
    %114 = vmatpush1.msra.mxu0 0.0
    %115 = vmatprep.subr.mxu0 0.0
    %116 = vmatpush1.msra.mxu0 0.0
    %117 = vmatprep.subr.mxu0 0.0
    %118 = vmatpush1.msra.mxu0 0.0
    %119 = vmatprep.subr.mxu0 0.0
    %120 = vmatpush1.msra.mxu0 0.0
    %121 = vmatprep.subr.mxu0 0.0
    %122 = vmatpush1.msra.mxu0 0.0
    %123 = vmatprep.subr.mxu0 0.0
    %124 = vmatpush1.msra.mxu0 0.0
    %125 = vmatprep.subr.mxu0 0.0
    %126 = vmatpush1.msra.mxu0 0.0
    %127 = vmatprep.subr.mxu0 0.0
    %128 = vmatpush1.msra.mxu0 0.0
    %129 = vmatprep.subr.mxu0 0.0
    %130 = vmatpush1.msra.mxu0 0.0
    %131 = vmatprep.subr.mxu0 0.0
    %132 = vmatpush1.msra.mxu0 0.0
    %133 = vmatprep.subr.mxu0 0.0
    %134 = vmatpush1.msra.mxu0 0.0
    %135 = vmatprep.subr.mxu0 0.0
    %136 = vmatpush1.msra.mxu0 %v62
    %137 = vmatprep.subr.mxu0 0.0
    %138 = vmatpush1.msra.mxu0 %v61
    %139 = vmatprep.subr.mxu0 0.0
    %140 = vmatpush1.msra.mxu0 %v60
    %141 = vmatprep.subr.mxu0 0.0
    %142 = vmatpush1.msra.mxu0 %v59
    %143 = vmatprep.subr.mxu0 0.0
    %144 = vmatpush1.msra.mxu0 %v58
    %145 = vmatprep.subr.mxu0 0.0
    %146 = vmatpush2.msra.mxu0 0.0
    %147 = vmatprep.subr.mxu0 0.0
    %148 = vmatpush2.msra.mxu0 0.0
    %149 = vmatprep.subr.mxu0 0.0
    %150 = vmatpush2.msra.mxu0 0.0
    %151 = vmatprep.subr.mxu0 0.0
    %152 = vmatpush2.msra.mxu0 0.0
    %153 = vmatprep.subr.mxu0 0.0
    %154 = vmatpush2.msra.mxu0 0.0
    %155 = vmatprep.subr.mxu0 0.0
    %156 = vmatpush2.msra.mxu0 0.0
    %157 = vmatprep.subr.mxu0 0.0
    %158 = vmatpush2.msra.mxu0 0.0
    %159 = vmatprep.subr.mxu0 0.0
    %160 = vmatpush2.msra.mxu0 0.0
    %161 = vmatprep.subr.mxu0 0.0
    %162 = vmatpush2.msra.mxu0 0.0
    %163 = vmatprep.subr.mxu0 0.0
    %164 = vmatpush2.msra.mxu0 0.0
    %165 = vmatprep.subr.mxu0 0.0
    %166 = vmatpush2.msra.mxu0 0.0
    %167 = vmatprep.subr.mxu0 0.0
    %168 = vmatpush2.msra.mxu0 0.0
    %169 = vmatprep.subr.mxu0 0.0
    %170 = vmatpush2.msra.mxu0 0.0
    %171 = vmatprep.subr.mxu0 0.0
    %172 = vmatpush2.msra.mxu0 0.0
    %173 = vmatprep.subr.mxu0 0.0
    %174 = vmatpush2.msra.mxu0 0.0
    %175 = vmatprep.subr.mxu0 0.0
    %176 = vmatpush2.msra.mxu0 0.0
    %177 = vmatprep.mubr.f32.mxu0 0.0
    %178 = vmatmul.mubr.f32.gmra.mxu0 %v66
    %v179 = vpop.f32.mrf.mxu0
    %v180 = vadd.f32 0.0, %v179
    %v181 = vpop.f32.mrf.mxu0
    %182 = vmatprep.mubr.f32.mxu0 0.0
    %183 = vmatmul.mubr.f32.gmra.mxu0 %v69
    %v184 = vpop.f32.mrf.mxu0
    %v185 = vadd.f32 0.0, %v184
    %v186 = vpop.f32.mrf.mxu0
    %187 = vmatprep.mubr.f32.mxu0 0.0
    %188 = vmatmul.mubr.f32.gmra.mxu0 %v72
    %v189 = vpop.f32.mrf.mxu0
    %v190 = vadd.f32 0.0, %v189
    %v191 = vpop.f32.mrf.mxu0
    %192 = vmatprep.mubr.f32.mxu0 0.0
    %193 = vmatmul.mubr.f32.gmra.mxu0 %v75
    %v194 = vpop.f32.mrf.mxu0
    %v195 = vadd.f32 0.0, %v194
    %v196 = vpop.f32.mrf.mxu0
    %197 = vmatprep.mubr.f32.mxu0 0.0
    %198 = vmatmul.mubr.f32.gmra.mxu0 %v78
    %v199 = vpop.f32.mrf.mxu0
    %v200 = vadd.f32 0.0, %v199
    %v201 = vpop.f32.mrf.mxu0
    %202 = vmatprep.mubr.f32.mxu0 0.0
    %203 = vmatmul.mubr.f32.gmra.mxu0 %v81
    %v204 = vpop.f32.mrf.mxu0
    %v205 = vadd.f32 0.0, %v204
    %v206 = vpop.f32.mrf.mxu0
    %207 = vmatprep.mubr.f32.mxu0 0.0
    %208 = vmatmul.mubr.f32.gmra.mxu0 %v84
    %v209 = vpop.f32.mrf.mxu0
    %v210 = vadd.f32 0.0, %v209
    %v211 = vpop.f32.mrf.mxu0
    %212 = vmatprep.mubr.f32.mxu0 0.0
    %213 = vmatmul.mubr.f32.gmra.mxu0 %v87
    %v214 = vpop.f32.mrf.mxu0
    %v215 = vadd.f32 0.0, %v214
    %v216 = vpop.f32.mrf.mxu0
    %217 = vmatprep.mubr.f32.mxu0 0.0
    %218 = vmatmul.mubr.f32.gmra.mxu0 %v90
    %v219 = vpop.f32.mrf.mxu0
    %v220 = vadd.f32 0.0, %v219
    %v221 = vpop.f32.mrf.mxu0
    %222 = vmatprep.mubr.f32.mxu0 0.0
    %223 = vmatmul.mubr.f32.gmra.mxu0 %v93
    %v224 = vpop.f32.mrf.mxu0
    %v225 = vadd.f32 0.0, %v224
    %v226 = vpop.f32.mrf.mxu0
    %227 = vmatprep.mubr.f32.mxu0 0.0
    %228 = vmatmul.mubr.f32.gmra.mxu0 %v96
    %v229 = vpop.f32.mrf.mxu0
    %v230 = vadd.f32 0.0, %v229
    %v231 = vpop.f32.mrf.mxu0
    %232 = vmatprep.mubr.f32.mxu0 0.0
    %233 = vmatmul.mubr.f32.gmra.mxu0 %v99
    %v234 = vpop.f32.mrf.mxu0
    %v235 = vadd.f32 0.0, %v234
    %v236 = vpop.f32.mrf.mxu0
    %237 = vmatprep.mubr.f32.mxu0 0.0
    %238 = vmatmul.mubr.f32.gmra.mxu0 %v102
    %v239 = vpop.f32.mrf.mxu0
    %v240 = vadd.f32 0.0, %v239
    %v241 = vpop.f32.mrf.mxu0
    %242 = vmatprep.mubr.f32.mxu0 0.0
    %243 = vmatmul.mubr.f32.gmra.mxu0 %v105
    %v244 = vpop.f32.mrf.mxu0
    %v245 = vadd.f32 0.0, %v244
    %v246 = vpop.f32.mrf.mxu0
    %247 = vmatprep.mubr.f32.mxu0 0.0
    %248 = vmatmul.mubr.f32.gmra.mxu0 %v108
    %v249 = vpop.f32.mrf.mxu0
    %v250 = vadd.f32 0.0, %v249
    %v251 = vpop.f32.mrf.mxu0
    %252 = vmatprep.mubr.f32.mxu0 0.0
    %253 = vmatmul.mubr.f32.gmra.mxu0 %v111
    %v254 = vpop.f32.mrf.mxu0
    %v255 = vadd.f32 0.0, %v254
    %v256 = vpop.f32.mrf.mxu0
    %257 = vdwg.mxu0
    %v258 = vmul.f32 %v180, 0.5
    %v259 = vmul.f32 %v185, 0.5
    %v260 = vmul.f32 %v190, 0.5
    %v261 = vmul.f32 %v195, 0.5
    %v262 = vmul.f32 %v200, 0.5
    %v263 = vmul.f32 %v205, 0.5
    %v264 = vmul.f32 %v210, 0.5
    %v265 = vmul.f32 %v215, 0.5
    %v266 = vmul.f32 %v220, 0.5
    %v267 = vmul.f32 %v225, 0.5
    %v268 = vmul.f32 %v230, 0.5
    %v269 = vmul.f32 %v235, 0.5
    %v270 = vmul.f32 %v240, 0.5
    %v271 = vmul.f32 %v245, 0.5
    %v272 = vmul.f32 %v250, 0.5
    %v273 = vmul.f32 %v255, 0.5
    %v274 = vtanh.pop %v258
    %v275 = vtanh.pop %v259
    %v276 = vtanh.pop %v260
    %v277 = vtanh.pop %v261
    %v278 = vtanh.pop %v262
    %v279 = vtanh.pop %v263
    %v280 = vtanh.pop %v264
    %v281 = vtanh.pop %v265
    %v282 = vtanh.pop %v266
    %v283 = vtanh.pop %v267
    %v284 = vtanh.pop %v268
    %v285 = vtanh.pop %v269
    %v286 = vtanh.pop %v270
    %v287 = vtanh.pop %v271
    %v288 = vtanh.pop %v272
    %v289 = vtanh.pop %v273
    %v290 = vmul.f32 %v274, 0.5
    %v291 = vmul.f32 %v275, 0.5
    %v292 = vmul.f32 %v276, 0.5
    %v293 = vmul.f32 %v277, 0.5
    %v294 = vmul.f32 %v278, 0.5
    %v295 = vmul.f32 %v279, 0.5
    %v296 = vmul.f32 %v280, 0.5
    %v297 = vmul.f32 %v281, 0.5
    %v298 = vmul.f32 %v282, 0.5
    %v299 = vmul.f32 %v283, 0.5
    %v300 = vmul.f32 %v284, 0.5
    %v301 = vmul.f32 %v285, 0.5
    %v302 = vmul.f32 %v286, 0.5
    %v303 = vmul.f32 %v287, 0.5
    %v304 = vmul.f32 %v288, 0.5
    %v305 = vmul.f32 %v289, 0.5
    %v306 = vadd.f32 %v290, 0.5
    %v307 = vadd.f32 %v291, 0.5
    %v308 = vadd.f32 %v292, 0.5
    %v309 = vadd.f32 %v293, 0.5
    %v310 = vadd.f32 %v294, 0.5
    %v311 = vadd.f32 %v295, 0.5
    %v312 = vadd.f32 %v296, 0.5
    %v313 = vadd.f32 %v297, 0.5
    %v314 = vadd.f32 %v298, 0.5
    %v315 = vadd.f32 %v299, 0.5
    %v316 = vadd.f32 %v300, 0.5
    %v317 = vadd.f32 %v301, 0.5
    %v318 = vadd.f32 %v302, 0.5
    %v319 = vadd.f32 %v303, 0.5
    %v320 = vadd.f32 %v304, 0.5
    %v321 = vadd.f32 %v305, 0.5
    %322 = vmatprep.subr.mxu0 0.0
    %323 = vmatpush1.xpose.msra.mxu0 %v321
    %324 = vmatprep.subr.mxu0 0.0
    %325 = vmatpush1.xpose.msra.mxu0 %v320
    %326 = vmatprep.subr.mxu0 0.0
    %327 = vmatpush1.xpose.msra.mxu0 %v319
    %328 = vmatprep.subr.mxu0 0.0
    %329 = vmatpush1.xpose.msra.mxu0 %v318
    %330 = vmatprep.subr.mxu0 0.0
    %331 = vmatpush1.xpose.msra.mxu0 %v317
    %332 = vmatprep.subr.mxu0 0.0
    %333 = vmatpush1.xpose.msra.mxu0 %v316
    %334 = vmatprep.subr.mxu0 0.0
    %335 = vmatpush1.xpose.msra.mxu0 %v315
    %336 = vmatprep.subr.mxu0 0.0
    %337 = vmatpush1.xpose.msra.mxu0 %v314
    %338 = vmatprep.subr.mxu0 0.0
    %339 = vmatpush1.xpose.msra.mxu0 %v313
    %340 = vmatprep.subr.mxu0 0.0
    %341 = vmatpush1.xpose.msra.mxu0 %v312
    %342 = vmatprep.subr.mxu0 0.0
    %343 = vmatpush1.xpose.msra.mxu0 %v311
    %344 = vmatprep.subr.mxu0 0.0
    %345 = vmatpush1.xpose.msra.mxu0 %v310
    %346 = vmatprep.subr.mxu0 0.0
    %347 = vmatpush1.xpose.msra.mxu0 %v309
    %348 = vmatprep.subr.mxu0 0.0
    %349 = vmatpush1.xpose.msra.mxu0 %v308
    %350 = vmatprep.subr.mxu0 0.0
    %351 = vmatpush1.xpose.msra.mxu0 %v307
    %352 = vmatprep.subr.mxu0 0.0
    %353 = vmatpush1.xpose.msra.mxu0 %v306
    %354 = vmatprep.subr.mxu0 0.0
    %355 = vmatpush2.xpose.msra.mxu0 0.0
    %356 = vmatprep.subr.mxu0 0.0
    %357 = vmatpush2.xpose.msra.mxu0 0.0
    %358 = vmatprep.subr.mxu0 0.0
    %359 = vmatpush2.xpose.msra.mxu0 0.0
    %360 = vmatprep.subr.mxu0 0.0
    %361 = vmatpush2.xpose.msra.mxu0 0.0
    %362 = vmatprep.subr.mxu0 0.0
    %363 = vmatpush2.xpose.msra.mxu0 0.0
    %364 = vmatprep.subr.mxu0 0.0
    %365 = vmatpush2.xpose.msra.mxu0 0.0
    %366 = vmatprep.subr.mxu0 0.0
    %367 = vmatpush2.xpose.msra.mxu0 0.0
    %368 = vmatprep.subr.mxu0 0.0
    %369 = vmatpush2.xpose.msra.mxu0 0.0
    %370 = vmatprep.subr.mxu0 0.0
    %371 = vmatpush2.xpose.msra.mxu0 0.0
    %372 = vmatprep.subr.mxu0 0.0
    %373 = vmatpush2.xpose.msra.mxu0 0.0
    %374 = vmatprep.subr.mxu0 0.0
    %375 = vmatpush2.xpose.msra.mxu0 0.0
    %376 = vmatprep.subr.mxu0 0.0
    %377 = vmatpush2.xpose.msra.mxu0 0.0
    %378 = vmatprep.subr.mxu0 0.0
    %379 = vmatpush2.xpose.msra.mxu0 0.0
    %380 = vmatprep.subr.mxu0 0.0
    %381 = vmatpush2.xpose.msra.mxu0 0.0
    %382 = vmatprep.subr.mxu0 0.0
    %383 = vmatpush2.xpose.msra.mxu0 0.0
    %384 = vmatprep.subr.mxu0 0.0
    %385 = vmatpush2.xpose.msra.mxu0 0.0
    %386 = vmatprep.mubr.f32.mxu0 0.0
    %387 = vmatmul.mubr.f32.gmra.mxu0 %v63
    %v388 = vpop.f32.mrf.mxu0
    %v389 = vadd.f32 0.0, %v388
    %v390 = vpop.f32.mrf.mxu0
    %391 = vdwg.mxu0
    %v392 = vmul.f32 %v389, 0.5
    %v393 = vtanh.pop %v392
    %v394 = vmul.f32 %v393, 0.5
    %v395 = vadd.f32 %v394, 0.5
    %396 = vst [vmem:[%s3] sm:$0x1] %v395
    // Predicated region
    $region22: #{_forward_padded.1} parent=1 // pred_check
      _
    $region23: #{_forward_padded.1} parent=1 // pred_check_branch
      %398 = sbr.rel (0) target = $region25
    $region24: #{_forward_padded.1} parent=1 // pred_region
      _
    $region25: #{_forward_padded.1} parent=1 // pred_fallthru
      _
    // Predicated region
    $region26: #{_forward_padded.1} parent=1 // pred_check
      _
    $region27: #{_forward_padded.1} parent=1 // pred_check_branch
      %400 = sbr.rel (0) target = $region29
    $region28: #{_forward_padded.1} parent=1 // pred_region
      _
    $region29: #{_forward_padded.1} parent=1 // pred_fallthru
      _
    %401 = vsyncpa [#allocation3], 1
    %402 = vsyncpa [#allocation5], 1

</llo_original>
